<compile_context>
chip_gen: v6e
topology: v6e:2x2x1
jax: 0.10.0
libtpu: 0.0.40
codegen_flags: <defaults>
</compile_context>

<pallas_src>
import functools

import jax
import jax.numpy as jnp
from jax import lax
from jax.experimental import pallas as pl
from jax.experimental.pallas import tpu as pltpu

BN_EPS = 1e-5


# --------------------------------------------------------------------------
# Fused Pallas kernel: one grid step == `nb` images
# --------------------------------------------------------------------------
def _dscnn_kernel(x_ref, w1_ref, b1_ref, w2_ref, b2_ref, w3_ref, b3_ref,
                  o_ref, pad_ref, *, H, W, nb, base, op_dtype):
    """conv1x1+BN+ReLU -> conv2x2(pad1)+BN+ReLU -> conv2x2+BN+ReLU, fused.

    Packed channels-first layout: image pixel (r, c) lives at lane
    base + r*T + c of pad_ref, with T = W+1 so the single zero lane between
    consecutive rows is the shared left/right conv halo.

      x_ref  : (nb, Cin, H*T)  pre-strided input (zero at lane r*T + W)
      w1_ref : (C, Cin)        1x1 conv weight, BN1 scale folded in
      b1_ref : (C, 1)          BN1 folded bias (f32)
      w2_ref : (C, 4C)         2x2 conv taps stacked along K, BN2 scale folded
      b2_ref : (C, 1)
      w3_ref : (C, 4C)         2x2 conv taps stacked along K, BN3 scale folded
      b3_ref : (C, 1)
      o_ref  : (nb, C, H*T)    packed output; lane i*T + j == pixel (i, j)
      pad_ref: VMEM (C, P) f32 scratch, P >= base + (H+2)*T
    """
    T = W + 1                      # packed row stride
    L1 = H * T                     # strided length of one image / the output
    L2 = (H + 2) * T               # stage-2 length: H+1 valid rows + slack row
    C, P = pad_ref.shape
    f32 = jnp.float32

    # Guard strips (top/bottom halo).  The interior [base, base+L1) is fully
    # rewritten below and its 1-lane inter-row gaps are re-zeroed by the mask.
    pad_ref[:, :base] = jnp.zeros((C, base), pad_ref.dtype)
    pad_ref[:, base + L1:P] = jnp.zeros((C, P - base - L1), pad_ref.dtype)

    # 1-lane-per-row gap mask: lane l maps to image column l % T; column W is
    # the shared zero-padding lane between rows and must stay exactly zero.
    col = lax.broadcasted_iota(jnp.int32, (1, L1), 1) % T
    keep = col != W

    for b in range(nb):
        # ---- stage 1: 1x1 conv (+folded BN) + ReLU -------------------------
        a1 = jnp.dot(w1_ref[...], x_ref[b], preferred_element_type=f32)
        a1 = jnp.maximum(a1 + b1_ref[...], 0.0)                      # (C, L1)
        pad_ref[:, base:base + L1] = jnp.where(keep, a1, 0.0)

        # ---- stage 2: 2x2 conv, stride 1, pad 1 (+BN) + ReLU ---------------
        # out(i,j) = sum_{ki,kj} W2[:,:,ki,kj] @ padded(i-1+ki, j-1+kj); the 4
        # taps are 4 lane-shifted views of pad_ref stacked along K into a
        # single (C,4C) x (4C,L2) MXU matmul (bf16 operands, f32 accumulate).
        s2 = jnp.concatenate(
            [pad_ref[:, base + (ki - 1) * T + (kj - 1):
                        base + (ki - 1) * T + (kj - 1) + L2]
             for ki in (0, 1) for kj in (0, 1)], axis=0)             # (4C, L2)
        a2 = jnp.dot(w2_ref[...], s2.astype(op_dtype),
                     preferred_element_type=f32)
        a2 = jnp.maximum(a2 + b2_ref[...], 0.0)                      # (C, L2)
        # a2 lane i*T + j == conv2 output pixel (i, j); rows i <= H are all
        # valid, the slack rows are garbage read only by cropped lanes below.

        # ---- stage 3: 2x2 conv, stride 1, no pad (+BN) + ReLU ---------------
        s3 = jnp.concatenate(
            [a2[:, ki * T + kj: ki * T + kj + L1]
             for ki in (0, 1) for kj in (0, 1)], axis=0)             # (4C, L1)
        a3 = jnp.dot(w3_ref[...], s3.astype(op_dtype),
                     preferred_element_type=f32)
        o_ref[b] = jnp.maximum(a3 + b3_ref[...], 0.0).astype(o_ref.dtype)


# --------------------------------------------------------------------------
# Wrapper: BN folding, weight stacking, input pre-striding, one pallas_call
# --------------------------------------------------------------------------
def _fold_bn(bn, eps=BN_EPS):
    scale = bn["gamma"] * lax.rsqrt(bn["var"] + eps)
    bias = bn["beta"] - bn["mean"] * scale
    return scale, bias


def dscnn_forward(x_nchw, params, *, compute_dtype=jnp.bfloat16,
                  images_per_step=None):
    x = x_nchw.astype(jnp.float32)
    N, Cin, H, W = x.shape
    C = params["w1"].shape[0]

    T = W + 1                                   # packed row stride
    L1 = H * T
    base = 128 * pl.cdiv(T + 1, 128)            # aligned interior start, >= T+1
    P = 128 * pl.cdiv(base + (H + 2) * T, 128)  # scratch lanes (rounded)

    # Images per grid step: amortise per-step overhead but keep >= 2 grid
    # steps so both TensorCores of a v7x megacore get work.
    if images_per_step is None:
        images_per_step = 1
        for cand in (8, 4, 2):
            if N % cand == 0 and N // cand >= 2:
                images_per_step = cand
                break
    nb = images_per_step
    assert N % nb == 0, (N, nb)

    # ---- fold BN running stats into the conv weights / biases ---------------
    sc1, c1 = _fold_bn(params["bn1"])
    sc2, c2 = _fold_bn(params["bn2"])
    sc3, c3 = _fold_bn(params["bn3"])

    w1 = (params["w1"].reshape(C, Cin) * sc1[:, None]).astype(compute_dtype)

    def stack_taps(w, s):  # (C, C, 2, 2) -> (C, 4C), K stacked as (ki, kj, cin)
        return (jnp.transpose(w, (0, 2, 3, 1)).reshape(C, 4 * C)
                * s[:, None]).astype(compute_dtype)

    w2 = stack_taps(params["w2"], sc2)
    w3 = stack_taps(params["w3"], sc3)

    # ---- pre-stride input: pixel (r, c) -> lane r*T + c, zero gap at col W --
    x_strided = jnp.pad(x, ((0, 0), (0, 0), (0, 0), (0, 1)))
    x_strided = x_strided.reshape(N, Cin, L1).astype(compute_dtype)

    kernel = functools.partial(_dscnn_kernel, H=H, W=W, nb=nb, base=base,
                               op_dtype=compute_dtype)
    out_strided = pl.pallas_call(
        kernel,
        out_shape=jax.ShapeDtypeStruct((N, C, L1), jnp.float32),
        grid_spec=pltpu.PrefetchScalarGridSpec(
            num_scalar_prefetch=0,
            grid=(N // nb,),
            in_specs=[
                pl.BlockSpec((nb, Cin, L1), lambda n: (n, 0, 0)),
                pl.BlockSpec((C, Cin), lambda n: (0, 0)),
                pl.BlockSpec((C, 1), lambda n: (0, 0)),
                pl.BlockSpec((C, 4 * C), lambda n: (0, 0)),
                pl.BlockSpec((C, 1), lambda n: (0, 0)),
                pl.BlockSpec((C, 4 * C), lambda n: (0, 0)),
                pl.BlockSpec((C, 1), lambda n: (0, 0)),
            ],
            out_specs=pl.BlockSpec((nb, C, L1), lambda n: (n, 0, 0)),
            scratch_shapes=[pltpu.VMEM((C, P), jnp.float32)],
        ),
        compiler_params=pltpu.CompilerParams(
            dimension_semantics=("parallel",),
            # Actual footprint is well under 1 MiB at these sizes; stay within
            # every chip's scoped VMEM (16 MiB v5e, 32 MiB v6e/v7x defaults).
            vmem_limit_bytes=32 * 1024 * 1024,
        ),
    )(x_strided, w1, c1[:, None].astype(jnp.float32),
      w2, c2[:, None].astype(jnp.float32),
      w3, c3[:, None].astype(jnp.float32))

    # packed rows (stride T = W+1) -> crop the single halo lane per row
    return out_strided.reshape(N, C, H, T)[:, :, :, :W]


# --------------------------------------------------------------------------
# Pure-JAX reference (lax.conv) for correctness checking
# --------------------------------------------------------------------------
def _ref_stage(x_nhwc, w_oihw, bn, padding):
    w_hwio = jnp.transpose(w_oihw, (2, 3, 1, 0))
    y = lax.conv_general_dilated(
        x_nhwc, w_hwio, window_strides=(1, 1),
        padding=[(padding, padding), (padding, padding)],
        dimension_numbers=("NHWC", "HWIO", "NHWC"))
    scale, bias = _fold_bn(bn)
    return jnp.maximum(y * scale + bias, 0.0)


def dscnn_reference(x_nchw, params):
    x = jnp.transpose(x_nchw, (0, 2, 3, 1)).astype(jnp.float32)
    x = _ref_stage(x, params["w1"], params["bn1"], padding=0)
    x = _ref_stage(x, params["w2"], params["bn2"], padding=1)
    x = _ref_stage(x, params["w3"], params["bn3"], padding=0)
    return jnp.transpose(x, (0, 3, 1, 2))


# --------------------------------------------------------------------------
# Deterministic parameter init (shapes from DSCNN.__init__)
# --------------------------------------------------------------------------
def init_params(key, inplanes, planes):
    ks = jax.random.split(key, 6)

    def bn(k):
        k1, k2, k3, k4 = jax.random.split(k, 4)
        return {
            "gamma": jax.random.uniform(k1, (planes,), jnp.float32, 0.5, 1.5),
            "beta": 0.1 * jax.random.normal(k2, (planes,), jnp.float32),
            "mean": 0.1 * jax.random.normal(k3, (planes,), jnp.float32),
            "var": jax.random.uniform(k4, (planes,), jnp.float32, 0.5, 1.5),
        }

    return {
        "w1": 0.2 * jax.random.normal(ks[0], (planes, inplanes, 1, 1), jnp.float32),
        "w2": 0.2 * jax.random.normal(ks[1], (planes, planes, 2, 2), jnp.float32),
        "w3": 0.2 * jax.random.normal(ks[2], (planes, planes, 2, 2), jnp.float32),
        "bn1": bn(ks[3]),
        "bn2": bn(ks[4]),
        "bn3": bn(ks[5]),
    }


if __name__ == "__main__":
    key = jax.random.PRNGKey(0)
    kx, kp = jax.random.split(key)

    inplanes, planes = 4, 8
    x = jax.random.normal(kx, (2, inplanes, 16, 16), jnp.float32)   # NCHW input
    params = init_params(kp, inplanes, planes)

    ref = jax.block_until_ready(dscnn_reference(x, params))

    # Exact-math path (f32 MXU operands): tight correctness check of layout/math.
    fwd_f32 = jax.jit(functools.partial(dscnn_forward, compute_dtype=jnp.float32))
    out_f32 = jax.block_until_ready(fwd_f32(x, params))
    assert out_f32.shape == (2, planes, 16, 16), out_f32.shape
    err_f32 = float(jnp.max(jnp.abs(out_f32 - ref)))
    assert err_f32 < 1e-3, f"f32 path max err {err_f32}"

    # Performance path (bf16 MXU operands, f32 accumulate/epilogue): loose check.
    fwd_bf16 = jax.jit(dscnn_forward)
    out_bf16 = jax.block_until_ready(fwd_bf16(x, params))
    assert out_bf16.shape == (2, planes, 16, 16), out_bf16.shape
    err_bf16 = float(jnp.max(jnp.abs(out_bf16 - ref)))
    assert err_bf16 < 1e-1, f"bf16 path max err {err_bf16}"

    print("KERNEL_OK")
</pallas_src>

<mosaic_0001>
module attributes {stable_mosaic.version = 11 : i64} {
  func.func @_dscnn_kernel(%arg0: i32, %arg1: memref<1x4x272xf32, #tpu.memory_space<vmem>>, %arg2: memref<8x4xf32, #tpu.memory_space<vmem>>, %arg3: memref<8x1xf32, #tpu.memory_space<vmem>>, %arg4: memref<8x32xf32, #tpu.memory_space<vmem>>, %arg5: memref<8x1xf32, #tpu.memory_space<vmem>>, %arg6: memref<8x32xf32, #tpu.memory_space<vmem>>, %arg7: memref<8x1xf32, #tpu.memory_space<vmem>>, %arg8: memref<1x8x272xf32, #tpu.memory_space<vmem>>, %arg9: memref<8x512xf32, #tpu.memory_space<vmem>>) attributes {dimension_semantics = [#tpu.dimension_semantics<parallel>], iteration_bounds = array<i64: 2>, scalar_prefetch = 0 : i64, scratch_operands = 1 : i64, tpu.core_type = #tpu.core_type<tc>, window_params = [{transform_indices = @transform_0, window_bounds = array<i64: 1, 4, 272>}, {pipeline_mode = #tpu.pipeline_mode<synchronous>, transform_indices = @transform_1, window_bounds = array<i64: 8, 4>}, {pipeline_mode = #tpu.pipeline_mode<synchronous>, transform_indices = @transform_2, window_bounds = array<i64: 8, 1>}, {pipeline_mode = #tpu.pipeline_mode<synchronous>, transform_indices = @transform_3, window_bounds = array<i64: 8, 32>}, {pipeline_mode = #tpu.pipeline_mode<synchronous>, transform_indices = @transform_4, window_bounds = array<i64: 8, 1>}, {pipeline_mode = #tpu.pipeline_mode<synchronous>, transform_indices = @transform_5, window_bounds = array<i64: 8, 32>}, {pipeline_mode = #tpu.pipeline_mode<synchronous>, transform_indices = @transform_6, window_bounds = array<i64: 8, 1>}, {transform_indices = @transform_7, window_bounds = array<i64: 1, 8, 272>}]} {
    %cst = arith.constant 0.000000e+00 : f32
    %0 = vector.broadcast %cst : f32 to vector<8x128xf32>
    %c0 = arith.constant 0 : index
    %c0_0 = arith.constant 0 : index
    %1 = vector.load %arg9[%c0, %c0_0] : memref<8x512xf32, #tpu.memory_space<vmem>>, vector<8x128xf32>
    tpu.vector_store %arg9[%c0, %c0_0], %0 {strides = array<i32>} : memref<8x512xf32, #tpu.memory_space<vmem>>, vector<8x128xf32>,
    %cst_1 = arith.constant 0.000000e+00 : f32
    %2 = vector.broadcast %cst_1 : f32 to vector<8x112xf32>
    %c0_2 = arith.constant 0 : index
    %c400 = arith.constant 400 : index
    %3 = vector.load %arg9[%c0_2, %c400] : memref<8x512xf32, #tpu.memory_space<vmem>>, vector<8x112xf32>
    tpu.vector_store %arg9[%c0_2, %c400], %2 {strides = array<i32>} : memref<8x512xf32, #tpu.memory_space<vmem>>, vector<8x112xf32>,
    %4 = tpu.iota {dimensions = array<i32: 1>} : vector<1x272xi32>
    %c17_i32 = arith.constant 17 : i32
    %c0_i32 = arith.constant 0 : i32
    %5 = arith.cmpi eq, %c17_i32, %c0_i32 : i32
    %c1_i32 = arith.constant 1 : i32
    %6 = arith.select %5, %c1_i32, %c17_i32 : i32
    %7 = vector.broadcast %6 : i32 to vector<1x272xi32>
    %8 = arith.remsi %4, %7 : vector<1x272xi32>
    %c0_i32_3 = arith.constant 0 : i32
    %9 = vector.broadcast %c0_i32_3 : i32 to vector<1x272xi32>
    %10 = arith.cmpi ne, %8, %9 : vector<1x272xi32>
    %c0_i32_4 = arith.constant 0 : i32
    %11 = vector.broadcast %c0_i32_4 : i32 to vector<1x272xi32>
    %12 = arith.cmpi slt, %8, %11 : vector<1x272xi32>
    %c0_i32_5 = arith.constant 0 : i32
    %13 = arith.cmpi slt, %6, %c0_i32_5 : i32
    %14 = vector.broadcast %13 : i1 to vector<1x272xi1>
    %15 = vector.broadcast %14 : vector<1x272xi1> to vector<1x272xi1>
    %16 = arith.xori %12, %15 : vector<1x272xi1>
    %17 = arith.andi %16, %10 : vector<1x272xi1>
    %18 = vector.broadcast %6 : i32 to vector<1x272xi32>
    %19 = arith.addi %8, %18 : vector<1x272xi32>
    %20 = arith.select %17, %19, %8 : vector<1x272xi1>, vector<1x272xi32>
    %c16_i32 = arith.constant 16 : i32
    %21 = vector.broadcast %c16_i32 : i32 to vector<1x272xi32>
    %22 = arith.cmpi ne, %20, %21 : vector<1x272xi32>
    %c0_6 = arith.constant 0 : index
    %c0_7 = arith.constant 0 : index
    %23 = vector.load %arg2[%c0_6, %c0_7] : memref<8x4xf32, #tpu.memory_space<vmem>>, vector<8x4xf32>
    %c0_8 = arith.constant 0 : index
    %c0_9 = arith.constant 0 : index
    %c0_10 = arith.constant 0 : index
    %24 = vector.load %arg1[%c0_8, %c0_9, %c0_10] : memref<1x4x272xf32, #tpu.memory_space<vmem>>, vector<1x4x272xf32>
    %25 = vector.shape_cast %24 : vector<1x4x272xf32> to vector<4x272xf32>
    %cst_11 = arith.constant dense<0.000000e+00> : vector<8x272xf32>
    %26 = tpu.matmul %23, %25, %cst_11 {dimension_numbers = #tpu.dot_dimension_numbers<[1], [0], [0], [1], [0, 0, 1, 1], [], []>} : vector<8x4xf32>, vector<4x272xf32>, vector<8x272xf32> -> vector<8x272xf32>
    %c0_12 = arith.constant 0 : index
    %c0_13 = arith.constant 0 : index
    %27 = vector.load %arg3[%c0_12, %c0_13] : memref<8x1xf32, #tpu.memory_space<vmem>>, vector<8x1xf32>
    %28 = vector.broadcast %27 : vector<8x1xf32> to vector<8x272xf32>
    %29 = arith.addf %26, %28 : vector<8x272xf32>
    %cst_14 = arith.constant 0.000000e+00 : f32
    %30 = vector.broadcast %cst_14 : f32 to vector<8x272xf32>
    %31 = arith.maximumf %29, %30 : vector<8x272xf32>
    %cst_15 = arith.constant 0.000000e+00 : f32
    %32 = vector.shape_cast %22 : vector<1x272xi1> to vector<1x272xi1>
    %33 = vector.broadcast %32 : vector<1x272xi1> to vector<8x272xi1>
    %34 = vector.broadcast %cst_15 : f32 to vector<8x272xf32>
    %35 = arith.select %33, %31, %34 : vector<8x272xi1>, vector<8x272xf32>
    %c0_16 = arith.constant 0 : index
    %c128 = arith.constant 128 : index
    %36 = vector.load %arg9[%c0_16, %c128] : memref<8x512xf32, #tpu.memory_space<vmem>>, vector<8x272xf32>
    tpu.vector_store %arg9[%c0_16, %c128], %35 {strides = array<i32>} : memref<8x512xf32, #tpu.memory_space<vmem>>, vector<8x272xf32>,
    %c0_17 = arith.constant 0 : index
    %c110 = arith.constant 110 : index
    %37 = vector.load %arg9[%c0_17, %c110] : memref<8x512xf32, #tpu.memory_space<vmem>>, vector<8x306xf32>
    %c0_18 = arith.constant 0 : index
    %c111 = arith.constant 111 : index
    %38 = vector.load %arg9[%c0_18, %c111] : memref<8x512xf32, #tpu.memory_space<vmem>>, vector<8x306xf32>
    %c0_19 = arith.constant 0 : index
    %c127 = arith.constant 127 : index
    %39 = vector.load %arg9[%c0_19, %c127] : memref<8x512xf32, #tpu.memory_space<vmem>>, vector<8x306xf32>
    %c0_20 = arith.constant 0 : index
    %c128_21 = arith.constant 128 : index
    %40 = vector.load %arg9[%c0_20, %c128_21] : memref<8x512xf32, #tpu.memory_space<vmem>>, vector<8x306xf32>
    %41 = tpu.concatenate %37, %38, %39, %40 in 0 : vector<8x306xf32>, vector<8x306xf32>, vector<8x306xf32>, vector<8x306xf32> -> vector<32x306xf32>
    %c0_22 = arith.constant 0 : index
    %c0_23 = arith.constant 0 : index
    %42 = vector.load %arg4[%c0_22, %c0_23] : memref<8x32xf32, #tpu.memory_space<vmem>>, vector<8x32xf32>
    %cst_24 = arith.constant dense<0.000000e+00> : vector<8x306xf32>
    %43 = tpu.matmul %42, %41, %cst_24 {dimension_numbers = #tpu.dot_dimension_numbers<[1], [0], [0], [1], [0, 0, 1, 1], [], []>} : vector<8x32xf32>, vector<32x306xf32>, vector<8x306xf32> -> vector<8x306xf32>
    %c0_25 = arith.constant 0 : index
    %c0_26 = arith.constant 0 : index
    %44 = vector.load %arg5[%c0_25, %c0_26] : memref<8x1xf32, #tpu.memory_space<vmem>>, vector<8x1xf32>
    %45 = vector.broadcast %44 : vector<8x1xf32> to vector<8x306xf32>
    %46 = arith.addf %43, %45 : vector<8x306xf32>
    %cst_27 = arith.constant 0.000000e+00 : f32
    %47 = vector.broadcast %cst_27 : f32 to vector<8x306xf32>
    %48 = arith.maximumf %46, %47 : vector<8x306xf32>
    %49 = vector.extract_strided_slice %48 {offsets = [0, 0], sizes = [8, 272], strides = [1, 1]} : vector<8x306xf32> to vector<8x272xf32>
    %50 = vector.extract_strided_slice %48 {offsets = [0, 1], sizes = [8, 272], strides = [1, 1]} : vector<8x306xf32> to vector<8x272xf32>
    %51 = vector.extract_strided_slice %48 {offsets = [0, 17], sizes = [8, 272], strides = [1, 1]} : vector<8x306xf32> to vector<8x272xf32>
    %52 = vector.extract_strided_slice %48 {offsets = [0, 18], sizes = [8, 272], strides = [1, 1]} : vector<8x306xf32> to vector<8x272xf32>
    %53 = tpu.concatenate %49, %50, %51, %52 in 0 : vector<8x272xf32>, vector<8x272xf32>, vector<8x272xf32>, vector<8x272xf32> -> vector<32x272xf32>
    %c0_28 = arith.constant 0 : index
    %c0_29 = arith.constant 0 : index
    %54 = vector.load %arg6[%c0_28, %c0_29] : memref<8x32xf32, #tpu.memory_space<vmem>>, vector<8x32xf32>
    %cst_30 = arith.constant dense<0.000000e+00> : vector<8x272xf32>
    %55 = tpu.matmul %54, %53, %cst_30 {dimension_numbers = #tpu.dot_dimension_numbers<[1], [0], [0], [1], [0, 0, 1, 1], [], []>} : vector<8x32xf32>, vector<32x272xf32>, vector<8x272xf32> -> vector<8x272xf32>
    %c0_31 = arith.constant 0 : index
    %c0_32 = arith.constant 0 : index
    %56 = vector.load %arg7[%c0_31, %c0_32] : memref<8x1xf32, #tpu.memory_space<vmem>>, vector<8x1xf32>
    %57 = vector.broadcast %56 : vector<8x1xf32> to vector<8x272xf32>
    %58 = arith.addf %55, %57 : vector<8x272xf32>
    %cst_33 = arith.constant 0.000000e+00 : f32
    %59 = vector.broadcast %cst_33 : f32 to vector<8x272xf32>
    %60 = arith.maximumf %58, %59 : vector<8x272xf32>
    %c0_34 = arith.constant 0 : index
    %c0_35 = arith.constant 0 : index
    %c0_36 = arith.constant 0 : index
    %61 = vector.load %arg8[%c0_34, %c0_35, %c0_36] : memref<1x8x272xf32, #tpu.memory_space<vmem>>, vector<1x8x272xf32>
    %62 = vector.shape_cast %61 : vector<1x8x272xf32> to vector<8x272xf32>
    %63 = vector.shape_cast %60 : vector<8x272xf32> to vector<1x8x272xf32>
    tpu.vector_store %arg8[%c0_34, %c0_35, %c0_36], %63 {strides = array<i32>} : memref<1x8x272xf32, #tpu.memory_space<vmem>>, vector<1x8x272xf32>,
    return
  }
  func.func @transform_0(%arg0: i32) -> (i32, i32, i32) {
    %c0_i32 = arith.constant 0 : i32
    %c0_i32_0 = arith.constant 0 : i32
    %c0_i32_1 = arith.constant 0 : i32
    return %arg0, %c0_i32, %c0_i32_0 : i32, i32, i32
  }
  func.func @transform_1(%arg0: i32) -> (i32, i32) {
    %c0_i32 = arith.constant 0 : i32
    %c0_i32_0 = arith.constant 0 : i32
    %c0_i32_1 = arith.constant 0 : i32
    return %c0_i32, %c0_i32_0 : i32, i32
  }
  func.func @transform_2(%arg0: i32) -> (i32, i32) {
    %c0_i32 = arith.constant 0 : i32
    %c0_i32_0 = arith.constant 0 : i32
    %c0_i32_1 = arith.constant 0 : i32
    return %c0_i32, %c0_i32_0 : i32, i32
  }
  func.func @transform_3(%arg0: i32) -> (i32, i32) {
    %c0_i32 = arith.constant 0 : i32
    %c0_i32_0 = arith.constant 0 : i32
    %c0_i32_1 = arith.constant 0 : i32
    return %c0_i32, %c0_i32_0 : i32, i32
  }
  func.func @transform_4(%arg0: i32) -> (i32, i32) {
    %c0_i32 = arith.constant 0 : i32
    %c0_i32_0 = arith.constant 0 : i32
    %c0_i32_1 = arith.constant 0 : i32
    return %c0_i32, %c0_i32_0 : i32, i32
  }
  func.func @transform_5(%arg0: i32) -> (i32, i32) {
    %c0_i32 = arith.constant 0 : i32
    %c0_i32_0 = arith.constant 0 : i32
    %c0_i32_1 = arith.constant 0 : i32
    return %c0_i32, %c0_i32_0 : i32, i32
  }
  func.func @transform_6(%arg0: i32) -> (i32, i32) {
    %c0_i32 = arith.constant 0 : i32
    %c0_i32_0 = arith.constant 0 : i32
    %c0_i32_1 = arith.constant 0 : i32
    return %c0_i32, %c0_i32_0 : i32, i32
  }
  func.func @transform_7(%arg0: i32) -> (i32, i32, i32) {
    %c0_i32 = arith.constant 0 : i32
    %c0_i32_0 = arith.constant 0 : i32
    %c0_i32_1 = arith.constant 0 : i32
    return %arg0, %c0_i32, %c0_i32_0 : i32, i32, i32
  }
}

</mosaic_0001>

<llo_original>
// kernel: dscnn_forward.1
$region0: #{dscnn_forward.1}
  #allocation0 [shape = 'u32[]', space=smem, size = 0x4, offset = 0x4, fixed_abs, tag = 'smem constant byte address 0x4 - core index']
  #allocation1 [shape = 'u32[144,128]{1,0:T(1,128)}', space=vmem, size = 0x12000, scoped, tag = 'internal scratch']
  #allocation2 [shape = 'f32[8,512]{1,0:T(8,128)}', space=vmem, size = 0x4000, scoped, tag = 'scratch operand']
  %s0 = inlined_call_operand.vmem [shape: f32[2,4,272], index: 0, kind: input, shape index: {}]
  %s1 = inlined_call_operand.vmem [shape: f32[8,4], index: 1, kind: input, shape index: {}]
  %s2 = inlined_call_operand.vmem [shape: f32[8,1], index: 2, kind: input, shape index: {}]
  %s3 = inlined_call_operand.vmem [shape: f32[8,32], index: 3, kind: input, shape index: {}]
  %s4 = inlined_call_operand.vmem [shape: f32[8,1], index: 4, kind: input, shape index: {}]
  %s5 = inlined_call_operand.vmem [shape: f32[8,32], index: 5, kind: input, shape index: {}]
  %s6 = inlined_call_operand.vmem [shape: f32[8,1], index: 6, kind: input, shape index: {}]
  %s7 = inlined_call_operand.vmem [shape: f32[2,8,272], index: 7, kind: output, shape index: {}]
  %s8 = sld [smem:[#allocation0]]
  $region61: #{dscnn_forward.1} parent=0
    _
  %s10 = ssub.s32 1, %s8
  %s11 = scalar_select 0, %s10, %s8
  loop: start=0, step=1, limit=4
  $region2: #{dscnn_forward.1} parent=0 // loop_pre_header
    _
  $region3: #{dscnn_forward.1} parent=0 // loop_header
    %s13 = sphi 0, %s17
    %p14 = scmp.ge.s32.totalorder %s13, 4
    %s23 = sphi 0, %s25
    %s26 = sphi 0, %s23
    %s27 = sphi 0, %s26
    %s43 = sphi 0, %s27
    %s47 = sphi 0, %s47
    %s49 = sphi 0, %s47
    %s50 = sphi 0, %s49
    %s64 = sphi 0, %s50
    %s68 = sphi 0, %s68
    %s70 = sphi 0, %s68
    %s71 = sphi 0, %s70
    %s85 = sphi 0, %s71
    %s89 = sphi 0, %s89
    %s91 = sphi 0, %s89
    %s92 = sphi 0, %s91
    %s106 = sphi 0, %s92
    %s110 = sphi 0, %s110
    %s112 = sphi 0, %s110
    %s113 = sphi 0, %s112
    %s127 = sphi 0, %s113
    %s131 = sphi 0, %s131
    %s133 = sphi 0, %s131
    %s134 = sphi 0, %s133
    %s148 = sphi 0, %s134
    %s152 = sphi 0, %s152
    %s154 = sphi 0, %s152
    %s155 = sphi 0, %s154
    %s169 = sphi 0, %s155
    %s175 = sphi 0, %s177
    %s178 = sphi 0, %s175
    %s179 = sphi 0, %s178
    %s195 = sphi 0, %s179
  $region4: #{dscnn_forward.1} parent=0 // loop_header_branch
    %16 = sbr.rel (%p14) target = $region8
  $region5: #{dscnn_forward.1} parent=0 // loop_body
    %s18 = ssub.s32 %s13, 1
    %s19 = ssub.s32 %s13, 2
    %s20 = sadd.s32 %s13, 1
    %s21 = ssub.s32 %s13, %s20
    %p22 = scmp.eq.s32.totalorder %s21, 0
    %s24 = sadd.s32 %s23, 1
    %s25 = scalar_select %p22, %s23, %s24
    %p28 = pneg %p22
    %p29 = scmp.eq.s32.totalorder %s13, 1
    %p30 = por %p28, %p29
    %p31 = scmp.ne.s32.totalorder %s23, %s26
    %p32 = scmp.eq.s32.totalorder %s13, 0
    %p33 = por %p31, %p32
    %p34 = scmp.ne.s32.totalorder %s23, %s26
    %p35 = scmp.eq.s32.totalorder %s18, 1
    %p36 = por %p34, %p35
    %p37 = scmp.ne.s32.totalorder %s26, %s27
    %p38 = scmp.eq.s32.totalorder %s18, 0
    %p39 = por %p37, %p38
    %p40 = scmp.ne.s32.totalorder %s26, %s27
    %p41 = scmp.eq.s32.totalorder %s19, 1
    %p42 = por %p40, %p41
    %p44 = scmp.ne.s32.totalorder %s27, %s43
    %p45 = scmp.eq.s32.totalorder %s19, 0
    %p46 = por %p44, %p45
    %s48 = sadd.s32 %s47, 1
    %p51 = scmp.eq.s32.totalorder %s13, 1
    %p52 = scmp.ne.s32.totalorder %s47, %s49
    %p53 = scmp.eq.s32.totalorder %s13, 0
    %p54 = por %p52, %p53
    %p55 = scmp.ne.s32.totalorder %s47, %s49
    %p56 = scmp.eq.s32.totalorder %s18, 1
    %p57 = por %p55, %p56
    %p58 = scmp.ne.s32.totalorder %s49, %s50
    %p59 = scmp.eq.s32.totalorder %s18, 0
    %p60 = por %p58, %p59
    %p61 = scmp.ne.s32.totalorder %s49, %s50
    %p62 = scmp.eq.s32.totalorder %s19, 1
    %p63 = por %p61, %p62
    %p65 = scmp.ne.s32.totalorder %s50, %s64
    %p66 = scmp.eq.s32.totalorder %s19, 0
    %p67 = por %p65, %p66
    %s69 = sadd.s32 %s68, 1
    %p72 = scmp.eq.s32.totalorder %s13, 1
    %p73 = scmp.ne.s32.totalorder %s68, %s70
    %p74 = scmp.eq.s32.totalorder %s13, 0
    %p75 = por %p73, %p74
    %p76 = scmp.ne.s32.totalorder %s68, %s70
    %p77 = scmp.eq.s32.totalorder %s18, 1
    %p78 = por %p76, %p77
    %p79 = scmp.ne.s32.totalorder %s70, %s71
    %p80 = scmp.eq.s32.totalorder %s18, 0
    %p81 = por %p79, %p80
    %p82 = scmp.ne.s32.totalorder %s70, %s71
    %p83 = scmp.eq.s32.totalorder %s19, 1
    %p84 = por %p82, %p83
    %p86 = scmp.ne.s32.totalorder %s71, %s85
    %p87 = scmp.eq.s32.totalorder %s19, 0
    %p88 = por %p86, %p87
    %s90 = sadd.s32 %s89, 1
    %p93 = scmp.eq.s32.totalorder %s13, 1
    %p94 = scmp.ne.s32.totalorder %s89, %s91
    %p95 = scmp.eq.s32.totalorder %s13, 0
    %p96 = por %p94, %p95
    %p97 = scmp.ne.s32.totalorder %s89, %s91
    %p98 = scmp.eq.s32.totalorder %s18, 1
    %p99 = por %p97, %p98
    %p100 = scmp.ne.s32.totalorder %s91, %s92
    %p101 = scmp.eq.s32.totalorder %s18, 0
    %p102 = por %p100, %p101
    %p103 = scmp.ne.s32.totalorder %s91, %s92
    %p104 = scmp.eq.s32.totalorder %s19, 1
    %p105 = por %p103, %p104
    %p107 = scmp.ne.s32.totalorder %s92, %s106
    %p108 = scmp.eq.s32.totalorder %s19, 0
    %p109 = por %p107, %p108
    %s111 = sadd.s32 %s110, 1
    %p114 = scmp.eq.s32.totalorder %s13, 1
    %p115 = scmp.ne.s32.totalorder %s110, %s112
    %p116 = scmp.eq.s32.totalorder %s13, 0
    %p117 = por %p115, %p116
    %p118 = scmp.ne.s32.totalorder %s110, %s112
    %p119 = scmp.eq.s32.totalorder %s18, 1
    %p120 = por %p118, %p119
    %p121 = scmp.ne.s32.totalorder %s112, %s113
    %p122 = scmp.eq.s32.totalorder %s18, 0
    %p123 = por %p121, %p122
    %p124 = scmp.ne.s32.totalorder %s112, %s113
    %p125 = scmp.eq.s32.totalorder %s19, 1
    %p126 = por %p124, %p125
    %p128 = scmp.ne.s32.totalorder %s113, %s127
    %p129 = scmp.eq.s32.totalorder %s19, 0
    %p130 = por %p128, %p129
    %s132 = sadd.s32 %s131, 1
    %p135 = scmp.eq.s32.totalorder %s13, 1
    %p136 = scmp.ne.s32.totalorder %s131, %s133
    %p137 = scmp.eq.s32.totalorder %s13, 0
    %p138 = por %p136, %p137
    %p139 = scmp.ne.s32.totalorder %s131, %s133
    %p140 = scmp.eq.s32.totalorder %s18, 1
    %p141 = por %p139, %p140
    %p142 = scmp.ne.s32.totalorder %s133, %s134
    %p143 = scmp.eq.s32.totalorder %s18, 0
    %p144 = por %p142, %p143
    %p145 = scmp.ne.s32.totalorder %s133, %s134
    %p146 = scmp.eq.s32.totalorder %s19, 1
    %p147 = por %p145, %p146
    %p149 = scmp.ne.s32.totalorder %s134, %s148
    %p150 = scmp.eq.s32.totalorder %s19, 0
    %p151 = por %p149, %p150
    %s153 = sadd.s32 %s152, 1
    %p156 = scmp.eq.s32.totalorder %s13, 1
    %p157 = scmp.ne.s32.totalorder %s152, %s154
    %p158 = scmp.eq.s32.totalorder %s13, 0
    %p159 = por %p157, %p158
    %p160 = scmp.ne.s32.totalorder %s152, %s154
    %p161 = scmp.eq.s32.totalorder %s18, 1
    %p162 = por %p160, %p161
    %p163 = scmp.ne.s32.totalorder %s154, %s155
    %p164 = scmp.eq.s32.totalorder %s18, 0
    %p165 = por %p163, %p164
    %p166 = scmp.ne.s32.totalorder %s154, %s155
    %p167 = scmp.eq.s32.totalorder %s19, 1
    %p168 = por %p166, %p167
    %p170 = scmp.ne.s32.totalorder %s155, %s169
    %p171 = scmp.eq.s32.totalorder %s19, 0
    %p172 = por %p170, %p171
    %s173 = ssub.s32 %s13, %s20
    %p174 = scmp.eq.s32.totalorder %s173, 0
    %s176 = sadd.s32 %s175, 1
    %s177 = scalar_select %p174, %s175, %s176
    %p180 = pneg %p174
    %p181 = scmp.eq.s32.totalorder %s13, 1
    %p182 = por %p180, %p181
    %p183 = scmp.ne.s32.totalorder %s175, %s178
    %p184 = scmp.eq.s32.totalorder %s13, 0
    %p185 = por %p183, %p184
    %p186 = scmp.ne.s32.totalorder %s175, %s178
    %p187 = scmp.eq.s32.totalorder %s18, 1
    %p188 = por %p186, %p187
    %p189 = scmp.ne.s32.totalorder %s178, %s179
    %p190 = scmp.eq.s32.totalorder %s18, 0
    %p191 = por %p189, %p190
    %p192 = scmp.ne.s32.totalorder %s178, %s179
    %p193 = scmp.eq.s32.totalorder %s19, 1
    %p194 = por %p192, %p193
    %p196 = scmp.ne.s32.totalorder %s179, %s195
    %p197 = scmp.eq.s32.totalorder %s19, 0
    %p198 = por %p196, %p197
    %p199 = scmp.le.s32.totalorder 1, %s13
    %p200 = scmp.lt.s32.totalorder %s13, 3
    %p201 = pnand %p199, %p200
    %p202 = pneg %p201
    // Predicated region
    $region9: #{dscnn_forward.1} parent=5 // pred_check
      _
    $region10: #{dscnn_forward.1} parent=5 // pred_check_branch
      %204 = sbr.rel (%p201) target = $region12
    $region11: #{dscnn_forward.1} parent=5 // pred_region
      %s205 = ssub.s32 %s13, 1
      // Predicated region
      $region13: #{dscnn_forward.1} parent=11 // pred_check
        %p206 = pneg %p60
      $region14: #{dscnn_forward.1} parent=11 // pred_check_branch
        %208 = sbr.rel (%p206) target = $region16
      $region15: #{dscnn_forward.1} parent=11 // pred_region
        _
      $region16: #{dscnn_forward.1} parent=11 // pred_fallthru
        _
      // Predicated region
      $region17: #{dscnn_forward.1} parent=11 // pred_check
        %p209 = pneg %p81
      $region18: #{dscnn_forward.1} parent=11 // pred_check_branch
        %211 = sbr.rel (%p209) target = $region20
      $region19: #{dscnn_forward.1} parent=11 // pred_region
        _
      $region20: #{dscnn_forward.1} parent=11 // pred_fallthru
        _
      // Predicated region
      $region21: #{dscnn_forward.1} parent=11 // pred_check
        %p212 = pneg %p102
      $region22: #{dscnn_forward.1} parent=11 // pred_check_branch
        %214 = sbr.rel (%p212) target = $region24
      $region23: #{dscnn_forward.1} parent=11 // pred_region
        _
      $region24: #{dscnn_forward.1} parent=11 // pred_fallthru
        _
      // Predicated region
      $region25: #{dscnn_forward.1} parent=11 // pred_check
        %p215 = pneg %p123
      $region26: #{dscnn_forward.1} parent=11 // pred_check_branch
        %217 = sbr.rel (%p215) target = $region28
      $region27: #{dscnn_forward.1} parent=11 // pred_region
        _
      $region28: #{dscnn_forward.1} parent=11 // pred_fallthru
        _
      // Predicated region
      $region29: #{dscnn_forward.1} parent=11 // pred_check
        %p218 = pneg %p144
      $region30: #{dscnn_forward.1} parent=11 // pred_check_branch
        %220 = sbr.rel (%p218) target = $region32
      $region31: #{dscnn_forward.1} parent=11 // pred_region
        _
      $region32: #{dscnn_forward.1} parent=11 // pred_fallthru
        _
      // Predicated region
      $region33: #{dscnn_forward.1} parent=11 // pred_check
        %p221 = pneg %p165
      $region34: #{dscnn_forward.1} parent=11 // pred_check_branch
        %223 = sbr.rel (%p221) target = $region36
      $region35: #{dscnn_forward.1} parent=11 // pred_region
        _
      $region36: #{dscnn_forward.1} parent=11 // pred_fallthru
        _
    $region12: #{dscnn_forward.1} parent=5 // pred_fallthru
      _
    %p224 = scmp.lt.s32.totalorder %s13, 2
    // Predicated region
    $region37: #{dscnn_forward.1} parent=5 // pred_check
      %p225 = pneg %p224
    $region38: #{dscnn_forward.1} parent=5 // pred_check_branch
      %227 = sbr.rel (%p225) target = $region40
    $region39: #{dscnn_forward.1} parent=5 // pred_region
      // Predicated region
      $region41: #{dscnn_forward.1} parent=39 // pred_check
        %p228 = pneg %p33
      $region42: #{dscnn_forward.1} parent=39 // pred_check_branch
        %230 = sbr.rel (%p228) target = $region44
      $region43: #{dscnn_forward.1} parent=39 // pred_region
        %p231 = scmp.lt.s32.totalorder %s13, 1
        %s232 = scalar_select %p231, %s13, 1
        %s233 = smul.addr %s232, 3
        %s234 = smul.addr %s233, 4
        %s235 = scalar_lea.vmem %s0, %s234
      $region44: #{dscnn_forward.1} parent=39 // pred_fallthru
        _
    $region40: #{dscnn_forward.1} parent=5 // pred_fallthru
      _
    %p236 = scmp.le.s32.totalorder 1, %s13
    %p237 = scmp.lt.s32.totalorder %s13, 3
    %p238 = pnand %p236, %p237
    %p239 = pneg %p238
    // Predicated region
    $region45: #{dscnn_forward.1} parent=5 // pred_check
      _
    $region46: #{dscnn_forward.1} parent=5 // pred_check_branch
      %241 = sbr.rel (%p238) target = $region48
    $region47: #{dscnn_forward.1} parent=5 // pred_region
      %s242 = ssub.s32 %s13, 1
      %p243 = scmp.lt.s32.totalorder %s18, 1
      %s244 = scalar_select %p243, %s18, 1
      %s245 = smul.addr %s244, 3
      %s246 = smul.addr %s245, 4
      %s247 = scalar_lea.vmem %s0, %s246
      %p248 = pneg %p39
      %p249 = pneg %p36
      %p250 = pneg %p60
      %p251 = pneg %p57
      %p252 = pneg %p81
      %p253 = pneg %p78
      %p254 = pneg %p102
      %p255 = pneg %p99
      %p256 = pneg %p123
      %p257 = pneg %p120
      %p258 = pneg %p144
      %p259 = pneg %p141
      %p260 = pneg %p165
      %p261 = pneg %p162
      %p262 = pneg %p191
      %p263 = pneg %p188
      %p264 = scmp.lt.s32.totalorder %s18, 1
      %s265 = scalar_select %p264, %s18, 1
      %s266 = smul.addr %s265, 3
      %s267 = smul.addr %s266, 8
      %s268 = scalar_lea.vmem %s7, %s267
      %p269 = scmp.lt.s32.totalorder %s18, 1
      %s270 = scalar_select %p269, %s18, 1
      %s271 = smul.addr %s270, 3
      %s272 = smul.addr %s271, 4
      %s273 = scalar_lea.vmem %s0, %s272
      %p274 = scmp.lt.s32.totalorder %s18, 1
      %s275 = scalar_select %p274, %s18, 1
      %s276 = smul.addr %s275, 3
      %s277 = smul.addr %s276, 8
      %s278 = scalar_lea.vmem %s7, %s277
      %279 = vst [vmem:[#allocation2] sm:$0xff] 0.0
      %vm280 = vcmask 1047680
      %281 = vst.msk [vmem:[#allocation2 + $0x18] sm:$0xff] %vm280, 0.0
      %v282 = vlaneseq
      %v283 = vand.u32 %v282, 127
      %v284 = vadd.s32 %v283, 128
      %v285 = vadd.s32 %v283, 256
      %vm286 = vcmp.lt.s32.totalorder %v283, 0
      %v287 = vsub.s32 0, %v283
      %v288 = vsel %vm286, %v287, %v283
      %v289 = vmul.u32.u64.compose %v288, 4042322161
      %v290 = vextract.low.u32 %v289
      %v291 = vextract.high.u32 %v289
      %v292 = vshrl.u32 %v291, 4
      %v293 = vmul.u32 %v292, 17
      %v294 = vsub.s32 %v288, %v293
      %v295 = vsub.s32 0, %v294
      %v296 = vsel %vm286, %v295, %v294
      %vm297 = vcmp.lt.s32.totalorder %v284, 0
      %v298 = vsub.s32 0, %v284
      %v299 = vsel %vm297, %v298, %v284
      %v300 = vmul.u32.u64.compose %v299, 4042322161
      %v301 = vextract.low.u32 %v300
      %v302 = vextract.high.u32 %v300
      %v303 = vshrl.u32 %v302, 4
      %v304 = vmul.u32 %v303, 17
      %v305 = vsub.s32 %v299, %v304
      %v306 = vsub.s32 0, %v305
      %v307 = vsel %vm297, %v306, %v305
      %vm308 = vcmp.lt.s32.totalorder %v285, 0
      %v309 = vsub.s32 0, %v285
      %v310 = vsel %vm308, %v309, %v285
      %v311 = vmul.u32.u64.compose %v310, 4042322161
      %v312 = vextract.low.u32 %v311
      %v313 = vextract.high.u32 %v311
      %v314 = vshrl.u32 %v313, 4
      %v315 = vmul.u32 %v314, 17
      %v316 = vsub.s32 %v310, %v315
      %v317 = vsub.s32 0, %v316
      %v318 = vsel %vm308, %v317, %v316
      %vm319 = vcmp.ne.s32.totalorder %v296, 0
      %vm320 = vcmp.ne.s32.totalorder %v307, 0
      %vm321 = vcmp.ne.s32.totalorder %v318, 0
      %vm322 = vcmp.lt.s32.totalorder %v296, 0
      %vm323 = vcmp.lt.s32.totalorder %v307, 0
      %vm324 = vcmp.lt.s32.totalorder %v318, 0
      %vm325 = vmand %vm322, %vm319
      %vm326 = vmand %vm323, %vm320
      %vm327 = vmand %vm324, %vm321
      %v328 = vadd.s32 %v296, 17
      %v329 = vadd.s32 %v307, 17
      %v330 = vadd.s32 %v318, 17
      %v331 = vsel %vm325, %v328, %v296
      %v332 = vsel %vm326, %v329, %v307
      %v333 = vsel %vm327, %v330, %v318
      %vm334 = vcmp.ne.s32.totalorder %v331, 16
      %vm335 = vcmp.ne.s32.totalorder %v332, 16
      %vm336 = vcmp.ne.s32.totalorder %v333, 16
      %v337 = vld [vmem:[%s1] sm:$0xff]
      %v338 = vld [vmem:[%s273] sm:$0xff]
      %v339 = vld [vmem:[%s273 + $0x8] sm:$0xf]
      %v340 = vld [vmem:[%s2] sm:$0xff]
      %342 = vset.pattern.permute.xlu0 0
      %343 = vperm.xlu0 %342, %v340
      %v344 = vpop.permute.xlu0 %343
      %v348 = vcombine.high %v338, %v338
      %vm349 = vcmask 31744
      %v351 = vsel %vm349, %v337, 0
      %vm353 = vcmask 1043456
      %v354 = vsel %vm353, %v338, 0
      %v356 = vsel %vm353, %v348, 0
      %v358 = vsel %vm353, %v339, 0
      %360 = vmatprep.subr.mxu0 0.0
      %361 = vmatpush1.msra.mxu0 0.0
      %362 = vmatprep.subr.mxu0 0.0
      %363 = vmatpush1.msra.mxu0 0.0
      %364 = vmatprep.subr.mxu0 0.0
      %365 = vmatpush1.msra.mxu0 0.0
      %366 = vmatprep.subr.mxu0 0.0
      %367 = vmatpush1.msra.mxu0 0.0
      %368 = vmatprep.subr.mxu0 0.0
      %369 = vmatpush1.msra.mxu0 0.0
      %370 = vmatprep.subr.mxu0 0.0
      %371 = vmatpush1.msra.mxu0 0.0
      %372 = vmatprep.subr.mxu0 0.0
      %373 = vmatpush1.msra.mxu0 0.0
      %374 = vmatprep.subr.mxu0 0.0
      %375 = vmatpush1.msra.mxu0 0.0
      %376 = vmatprep.subr.mxu0 0.0
      %377 = vmatpush1.msra.mxu0 0.0
      %378 = vmatprep.subr.mxu0 0.0
      %379 = vmatpush1.msra.mxu0 0.0
      %380 = vmatprep.subr.mxu0 0.0
      %381 = vmatpush1.msra.mxu0 0.0
      %382 = vmatprep.subr.mxu0 0.0
      %383 = vmatpush1.msra.mxu0 0.0
      %384 = vmatprep.subr.mxu0 0.0
      %385 = vmatpush1.msra.mxu0 0.0
      %386 = vmatprep.subr.mxu0 0.0
      %387 = vmatpush1.msra.mxu0 0.0
      %388 = vmatprep.subr.mxu0 0.0
      %389 = vmatpush1.msra.mxu0 0.0
      %390 = vmatprep.subr.mxu0 %v356
      %391 = vmatpush1.msra.mxu0 %v354
      %392 = vmatprep.subr.mxu0 0.0
      %393 = vmatpush2.msra.mxu0 0.0
      %394 = vmatprep.subr.mxu0 0.0
      %395 = vmatpush2.msra.mxu0 0.0
      %396 = vmatprep.subr.mxu0 0.0
      %397 = vmatpush2.msra.mxu0 0.0
      %398 = vmatprep.subr.mxu0 0.0
      %399 = vmatpush2.msra.mxu0 0.0
      %400 = vmatprep.subr.mxu0 0.0
      %401 = vmatpush2.msra.mxu0 0.0
      %402 = vmatprep.subr.mxu0 0.0
      %403 = vmatpush2.msra.mxu0 0.0
      %404 = vmatprep.subr.mxu0 0.0
      %405 = vmatpush2.msra.mxu0 0.0
      %406 = vmatprep.subr.mxu0 0.0
      %407 = vmatpush2.msra.mxu0 0.0
      %408 = vmatprep.subr.mxu0 0.0
      %409 = vmatpush2.msra.mxu0 0.0
      %410 = vmatprep.subr.mxu0 0.0
      %411 = vmatpush2.msra.mxu0 0.0
      %412 = vmatprep.subr.mxu0 0.0
      %413 = vmatpush2.msra.mxu0 0.0
      %414 = vmatprep.subr.mxu0 0.0
      %415 = vmatpush2.msra.mxu0 0.0
      %416 = vmatprep.subr.mxu0 0.0
      %417 = vmatpush2.msra.mxu0 0.0
      %418 = vmatprep.subr.mxu0 0.0
      %419 = vmatpush2.msra.mxu0 0.0
      %420 = vmatprep.subr.mxu0 0.0
      %421 = vmatpush2.msra.mxu0 0.0
      %422 = vmatprep.subr.mxu0 0.0
      %423 = vmatpush2.msra.mxu0 0.0
      %424 = vmatprep.mubr.f32.mxu0 0.0
      %425 = vmatmul.mubr.f32.gmra.mxu0 %v351
      %v426 = vpop.f32.mrf.mxu0
      %v427 = vadd.f32 %v344, %v426
      %v428 = vpop.f32.mrf.mxu0
      %v429 = vadd.f32 %v344, %v428
      %430 = vdwg.mxu0
      %431 = vmatprep.subr.mxu0 0.0
      %432 = vmatpush1.msra.mxu0 0.0
      %433 = vmatprep.subr.mxu0 0.0
      %434 = vmatpush1.msra.mxu0 0.0
      %435 = vmatprep.subr.mxu0 0.0
      %436 = vmatpush1.msra.mxu0 0.0
      %437 = vmatprep.subr.mxu0 0.0
      %438 = vmatpush1.msra.mxu0 0.0
      %439 = vmatprep.subr.mxu0 0.0
      %440 = vmatpush1.msra.mxu0 0.0
      %441 = vmatprep.subr.mxu0 0.0
      %442 = vmatpush1.msra.mxu0 0.0
      %443 = vmatprep.subr.mxu0 0.0
      %444 = vmatpush1.msra.mxu0 0.0
      %445 = vmatprep.subr.mxu0 0.0
      %446 = vmatpush1.msra.mxu0 0.0
      %447 = vmatprep.subr.mxu0 0.0
      %448 = vmatpush1.msra.mxu0 0.0
      %449 = vmatprep.subr.mxu0 0.0
      %450 = vmatpush1.msra.mxu0 0.0
      %451 = vmatprep.subr.mxu0 0.0
      %452 = vmatpush1.msra.mxu0 0.0
      %453 = vmatprep.subr.mxu0 0.0
      %454 = vmatpush1.msra.mxu0 0.0
      %455 = vmatprep.subr.mxu0 0.0
      %456 = vmatpush1.msra.mxu0 0.0
      %457 = vmatprep.subr.mxu0 0.0
      %458 = vmatpush1.msra.mxu0 0.0
      %459 = vmatprep.subr.mxu0 0.0
      %460 = vmatpush1.msra.mxu0 0.0
      %461 = vmatprep.subr.mxu0 0.0
      %462 = vmatpush1.msra.mxu0 %v358
      %463 = vmatprep.subr.mxu0 0.0
      %464 = vmatpush2.msra.mxu0 0.0
      %465 = vmatprep.subr.mxu0 0.0
      %466 = vmatpush2.msra.mxu0 0.0
      %467 = vmatprep.subr.mxu0 0.0
      %468 = vmatpush2.msra.mxu0 0.0
      %469 = vmatprep.subr.mxu0 0.0
      %470 = vmatpush2.msra.mxu0 0.0
      %471 = vmatprep.subr.mxu0 0.0
      %472 = vmatpush2.msra.mxu0 0.0
      %473 = vmatprep.subr.mxu0 0.0
      %474 = vmatpush2.msra.mxu0 0.0
      %475 = vmatprep.subr.mxu0 0.0
      %476 = vmatpush2.msra.mxu0 0.0
      %477 = vmatprep.subr.mxu0 0.0
      %478 = vmatpush2.msra.mxu0 0.0
      %479 = vmatprep.subr.mxu0 0.0
      %480 = vmatpush2.msra.mxu0 0.0
      %481 = vmatprep.subr.mxu0 0.0
      %482 = vmatpush2.msra.mxu0 0.0
      %483 = vmatprep.subr.mxu0 0.0
      %484 = vmatpush2.msra.mxu0 0.0
      %485 = vmatprep.subr.mxu0 0.0
      %486 = vmatpush2.msra.mxu0 0.0
      %487 = vmatprep.subr.mxu0 0.0
      %488 = vmatpush2.msra.mxu0 0.0
      %489 = vmatprep.subr.mxu0 0.0
      %490 = vmatpush2.msra.mxu0 0.0
      %491 = vmatprep.subr.mxu0 0.0
      %492 = vmatpush2.msra.mxu0 0.0
      %493 = vmatprep.subr.mxu0 0.0
      %494 = vmatpush2.msra.mxu0 0.0
      %495 = vmatprep.mubr.f32.mxu0 0.0
      %496 = vmatmul.mubr.f32.gmra.mxu0 %v351
      %v497 = vpop.f32.mrf.mxu0
      %v498 = vadd.f32 %v344, %v497
      %v499 = vpop.f32.mrf.mxu0
      %500 = vdwg.mxu0
      %v501 = vmax.f32 %v427, 0.0
      %v502 = vmax.f32 %v429, 0.0
      %v503 = vmax.f32 %v498, 0.0
      %v504 = vsel %vm334, 1, 0
      %v505 = vsel %vm335, 1, 0
      %v506 = vsel %vm336, 1, 0
      %vm507 = vcmp.eq.s32.totalorder %v504, 1
      %vm508 = vcmp.eq.s32.totalorder %v505, 1
      %vm509 = vcmp.eq.s32.totalorder %v506, 1
      %v510 = vsel %vm507, %v501, 0.0
      %v511 = vsel %vm508, %v502, 0.0
      %v512 = vsel %vm509, %v503, 0.0
      %513 = vst [vmem:[#allocation2 + $0x8] sm:$0xff] %v510
      %514 = vst [vmem:[#allocation2 + $0x10] sm:$0xff] %v511
      %vm515 = vcmask 130048
      %516 = vst.msk [vmem:[#allocation2 + $0x18] sm:$0xff] %vm515, %v512
      %v517 = vld [vmem:[#allocation2] sm:$0xff]
      %v518 = vld [vmem:[#allocation2 + $0x8] sm:$0xff]
      %v519 = vld [vmem:[#allocation2 + $0x10] sm:$0xff]
      %v520 = vld [vmem:[#allocation2 + $0x18] sm:$0xff]
      %525 = vrot.lane.b32.xlu0 %v517, 127
      %v526 = vpop.permute.xlu0 %525
      %527 = vrot.lane.b32.xlu0 %v518, 127
      %v528 = vpop.permute.xlu0 %527
      %529 = vrot.lane.b32.xlu0 %v519, 127
      %v530 = vpop.permute.xlu0 %529
      %531 = vrot.lane.b32.xlu0 %v520, 127
      %v532 = vpop.permute.xlu0 %531
      %vm533 = vcmask 1039360
      %v534 = vsel %vm533, %v526, %v528
      %v535 = vsel %vm533, %v528, %v530
      %v536 = vsel %vm533, %v530, %v532
      %537 = vrot.lane.b32.xlu0 %v517, 111
      %v538 = vpop.permute.xlu0 %537
      %539 = vrot.lane.b32.xlu0 %v518, 111
      %v540 = vpop.permute.xlu0 %539
      %541 = vrot.lane.b32.xlu0 %v519, 111
      %v542 = vpop.permute.xlu0 %541
      %543 = vrot.lane.b32.xlu0 %v520, 111
      %v544 = vpop.permute.xlu0 %543
      %vm545 = vcmask 908288
      %v546 = vsel %vm545, %v538, %v540
      %v547 = vsel %vm545, %v540, %v542
      %v548 = vsel %vm545, %v542, %v544
      %549 = vrot.lane.b32.xlu0 %v518, 110
      %v550 = vpop.permute.xlu0 %549
      %551 = vrot.lane.b32.xlu0 %v519, 110
      %v552 = vpop.permute.xlu0 %551
      %553 = vrot.lane.b32.xlu0 %v520, 110
      %v554 = vpop.permute.xlu0 %553
      %vm555 = vcmask 900096
      %v556 = vsel %vm555, %v550, %v552
      %v557 = vsel %vm555, %v552, %v554
      %v558 = vld [vmem:[%s3] sm:$0xff]
      %v559 = vld [vmem:[%s4] sm:$0xff]
      %561 = vset.pattern.permute.xlu0 0
      %562 = vperm.xlu0 %561, %v559
      %v563 = vpop.permute.xlu0 %562
      %565 = vrot.lane.b32.xlu0 %v517, 18
      %v566 = vpop.permute.xlu0 %565
      %567 = vrot.lane.b32.xlu0 %v518, 18
      %v568 = vpop.permute.xlu0 %567
      %569 = vrot.lane.b32.xlu0 %v519, 18
      %v570 = vpop.permute.xlu0 %569
      %571 = vrot.lane.b32.xlu0 %v520, 18
      %v572 = vpop.permute.xlu0 %571
      %573 = vrot.lane.b32.xlu0 %v534, 18
      %v574 = vpop.permute.xlu0 %573
      %575 = vrot.lane.b32.xlu0 %v535, 18
      %v576 = vpop.permute.xlu0 %575
      %577 = vrot.lane.b32.xlu0 %v536, 18
      %v578 = vpop.permute.xlu0 %577
      %579 = vrot.lane.b32.xlu0 %v532, 18
      %v580 = vpop.permute.xlu0 %579
      %581 = vrot.lane.b32.xlu0 %v546, 18
      %v582 = vpop.permute.xlu0 %581
      %583 = vrot.lane.b32.xlu0 %v547, 18
      %v584 = vpop.permute.xlu0 %583
      %585 = vrot.lane.b32.xlu0 %v548, 18
      %v586 = vpop.permute.xlu0 %585
      %587 = vrot.lane.b32.xlu0 %v544, 18
      %v588 = vpop.permute.xlu0 %587
      %589 = vrot.lane.b32.xlu0 %v550, 18
      %v590 = vpop.permute.xlu0 %589
      %591 = vrot.lane.b32.xlu0 %v556, 18
      %v592 = vpop.permute.xlu0 %591
      %593 = vrot.lane.b32.xlu0 %v557, 18
      %v594 = vpop.permute.xlu0 %593
      %595 = vrot.lane.b32.xlu0 %v554, 18
      %v596 = vpop.permute.xlu0 %595
      %vm597 = vcmask 146432
      %v598 = vsel %vm597, %v566, %v568
      %v599 = vsel %vm597, %v568, %v570
      %v600 = vsel %vm597, %v570, %v572
      %v601 = vsel %vm597, %v574, %v576
      %v602 = vsel %vm597, %v576, %v578
      %v603 = vsel %vm597, %v578, %v580
      %v604 = vsel %vm597, %v582, %v584
      %v605 = vsel %vm597, %v584, %v586
      %v606 = vsel %vm597, %v586, %v588
      %v607 = vsel %vm597, %v590, %v592
      %v608 = vsel %vm597, %v592, %v594
      %v609 = vsel %vm597, %v594, %v596
      %vm622 = vcmask 261120
      %v624 = vsel %vm622, %v558, 0
      %626 = vmatprep.subr.mxu0 0.0
      %627 = vmatpush1.msra.mxu0 0.0
      %628 = vmatprep.subr.mxu0 0.0
      %629 = vmatpush1.msra.mxu0 0.0
      %630 = vmatprep.subr.mxu0 0.0
      %631 = vmatpush1.msra.mxu0 0.0
      %632 = vmatprep.subr.mxu0 0.0
      %633 = vmatpush1.msra.mxu0 0.0
      %634 = vmatprep.subr.mxu0 0.0
      %635 = vmatpush1.msra.mxu0 0.0
      %636 = vmatprep.subr.mxu0 0.0
      %637 = vmatpush1.msra.mxu0 0.0
      %638 = vmatprep.subr.mxu0 0.0
      %639 = vmatpush1.msra.mxu0 0.0
      %640 = vmatprep.subr.mxu0 0.0
      %641 = vmatpush1.msra.mxu0 0.0
      %642 = vmatprep.subr.mxu0 0.0
      %643 = vmatpush1.msra.mxu0 0.0
      %644 = vmatprep.subr.mxu0 0.0
      %645 = vmatpush1.msra.mxu0 0.0
      %646 = vmatprep.subr.mxu0 0.0
      %647 = vmatpush1.msra.mxu0 0.0
      %648 = vmatprep.subr.mxu0 0.0
      %649 = vmatpush1.msra.mxu0 0.0
      %650 = vmatprep.subr.mxu0 %v608
      %651 = vmatpush1.msra.mxu0 %v607
      %652 = vmatprep.subr.mxu0 %v605
      %653 = vmatpush1.msra.mxu0 %v604
      %654 = vmatprep.subr.mxu0 %v602
      %655 = vmatpush1.msra.mxu0 %v601
      %656 = vmatprep.subr.mxu0 %v599
      %657 = vmatpush1.msra.mxu0 %v598
      %658 = vmatprep.subr.mxu0 0.0
      %659 = vmatpush2.msra.mxu0 0.0
      %660 = vmatprep.subr.mxu0 0.0
      %661 = vmatpush2.msra.mxu0 0.0
      %662 = vmatprep.subr.mxu0 0.0
      %663 = vmatpush2.msra.mxu0 0.0
      %664 = vmatprep.subr.mxu0 0.0
      %665 = vmatpush2.msra.mxu0 0.0
      %666 = vmatprep.subr.mxu0 0.0
      %667 = vmatpush2.msra.mxu0 0.0
      %668 = vmatprep.subr.mxu0 0.0
      %669 = vmatpush2.msra.mxu0 0.0
      %670 = vmatprep.subr.mxu0 0.0
      %671 = vmatpush2.msra.mxu0 0.0
      %672 = vmatprep.subr.mxu0 0.0
      %673 = vmatpush2.msra.mxu0 0.0
      %674 = vmatprep.subr.mxu0 0.0
      %675 = vmatpush2.msra.mxu0 0.0
      %676 = vmatprep.subr.mxu0 0.0
      %677 = vmatpush2.msra.mxu0 0.0
      %678 = vmatprep.subr.mxu0 0.0
      %679 = vmatpush2.msra.mxu0 0.0
      %680 = vmatprep.subr.mxu0 0.0
      %681 = vmatpush2.msra.mxu0 0.0
      %682 = vmatprep.subr.mxu0 0.0
      %683 = vmatpush2.msra.mxu0 0.0
      %684 = vmatprep.subr.mxu0 0.0
      %685 = vmatpush2.msra.mxu0 0.0
      %686 = vmatprep.subr.mxu0 0.0
      %687 = vmatpush2.msra.mxu0 0.0
      %688 = vmatprep.subr.mxu0 0.0
      %689 = vmatpush2.msra.mxu0 0.0
      %690 = vmatprep.mubr.f32.mxu0 0.0
      %691 = vmatmul.mubr.f32.gmra.mxu0 %v624
      %v692 = vpop.f32.mrf.mxu0
      %v693 = vadd.f32 %v563, %v692
      %v694 = vpop.f32.mrf.mxu0
      %v695 = vadd.f32 %v563, %v694
      %696 = vdwg.mxu0
      %697 = vmatprep.subr.mxu0 0.0
      %698 = vmatpush1.msra.mxu0 0.0
      %699 = vmatprep.subr.mxu0 0.0
      %700 = vmatpush1.msra.mxu0 0.0
      %701 = vmatprep.subr.mxu0 0.0
      %702 = vmatpush1.msra.mxu0 0.0
      %703 = vmatprep.subr.mxu0 0.0
      %704 = vmatpush1.msra.mxu0 0.0
      %705 = vmatprep.subr.mxu0 0.0
      %706 = vmatpush1.msra.mxu0 0.0
      %707 = vmatprep.subr.mxu0 0.0
      %708 = vmatpush1.msra.mxu0 0.0
      %709 = vmatprep.subr.mxu0 0.0
      %710 = vmatpush1.msra.mxu0 0.0
      %711 = vmatprep.subr.mxu0 0.0
      %712 = vmatpush1.msra.mxu0 0.0
      %713 = vmatprep.subr.mxu0 0.0
      %714 = vmatpush1.msra.mxu0 0.0
      %715 = vmatprep.subr.mxu0 0.0
      %716 = vmatpush1.msra.mxu0 0.0
      %717 = vmatprep.subr.mxu0 0.0
      %718 = vmatpush1.msra.mxu0 0.0
      %719 = vmatprep.subr.mxu0 0.0
      %720 = vmatpush1.msra.mxu0 0.0
      %721 = vmatprep.subr.mxu0 0.0
      %722 = vmatpush1.msra.mxu0 %v609
      %723 = vmatprep.subr.mxu0 0.0
      %724 = vmatpush1.msra.mxu0 %v606
      %725 = vmatprep.subr.mxu0 0.0
      %726 = vmatpush1.msra.mxu0 %v603
      %727 = vmatprep.subr.mxu0 0.0
      %728 = vmatpush1.msra.mxu0 %v600
      %729 = vmatprep.subr.mxu0 0.0
      %730 = vmatpush2.msra.mxu0 0.0
      %731 = vmatprep.subr.mxu0 0.0
      %732 = vmatpush2.msra.mxu0 0.0
      %733 = vmatprep.subr.mxu0 0.0
      %734 = vmatpush2.msra.mxu0 0.0
      %735 = vmatprep.subr.mxu0 0.0
      %736 = vmatpush2.msra.mxu0 0.0
      %737 = vmatprep.subr.mxu0 0.0
      %738 = vmatpush2.msra.mxu0 0.0
      %739 = vmatprep.subr.mxu0 0.0
      %740 = vmatpush2.msra.mxu0 0.0
      %741 = vmatprep.subr.mxu0 0.0
      %742 = vmatpush2.msra.mxu0 0.0
      %743 = vmatprep.subr.mxu0 0.0
      %744 = vmatpush2.msra.mxu0 0.0
      %745 = vmatprep.subr.mxu0 0.0
      %746 = vmatpush2.msra.mxu0 0.0
      %747 = vmatprep.subr.mxu0 0.0
      %748 = vmatpush2.msra.mxu0 0.0
      %749 = vmatprep.subr.mxu0 0.0
      %750 = vmatpush2.msra.mxu0 0.0
      %751 = vmatprep.subr.mxu0 0.0
      %752 = vmatpush2.msra.mxu0 0.0
      %753 = vmatprep.subr.mxu0 0.0
      %754 = vmatpush2.msra.mxu0 0.0
      %755 = vmatprep.subr.mxu0 0.0
      %756 = vmatpush2.msra.mxu0 0.0
      %757 = vmatprep.subr.mxu0 0.0
      %758 = vmatpush2.msra.mxu0 0.0
      %759 = vmatprep.subr.mxu0 0.0
      %760 = vmatpush2.msra.mxu0 0.0
      %761 = vmatprep.mubr.f32.mxu0 0.0
      %762 = vmatmul.mubr.f32.gmra.mxu0 %v624
      %v763 = vpop.f32.mrf.mxu0
      %v764 = vadd.f32 %v563, %v763
      %v765 = vpop.f32.mrf.mxu0
      %766 = vdwg.mxu0
      %v767 = vmax.f32 %v693, 0.0
      %v768 = vmax.f32 %v695, 0.0
      %v769 = vmax.f32 %v764, 0.0
      %773 = vrot.lane.b32.xlu0 %v767, 127
      %v774 = vpop.permute.xlu0 %773
      %775 = vrot.lane.b32.xlu0 %v768, 127
      %v776 = vpop.permute.xlu0 %775
      %777 = vrot.lane.b32.xlu0 %v769, 127
      %v778 = vpop.permute.xlu0 %777
      %v779 = vsel %vm533, %v774, %v776
      %v780 = vsel %vm533, %v776, %v778
      %784 = vrot.lane.b32.xlu0 %v767, 111
      %v785 = vpop.permute.xlu0 %784
      %786 = vrot.lane.b32.xlu0 %v768, 111
      %v787 = vpop.permute.xlu0 %786
      %788 = vrot.lane.b32.xlu0 %v769, 111
      %v789 = vpop.permute.xlu0 %788
      %v790 = vsel %vm545, %v785, %v787
      %v791 = vsel %vm545, %v787, %v789
      %795 = vrot.lane.b32.xlu0 %v767, 110
      %v796 = vpop.permute.xlu0 %795
      %797 = vrot.lane.b32.xlu0 %v768, 110
      %v798 = vpop.permute.xlu0 %797
      %799 = vrot.lane.b32.xlu0 %v769, 110
      %v800 = vpop.permute.xlu0 %799
      %v801 = vsel %vm555, %v796, %v798
      %v802 = vsel %vm555, %v798, %v800
      %v806 = vld [vmem:[%s5] sm:$0xff]
      %v807 = vld [vmem:[%s6] sm:$0xff]
      %809 = vset.pattern.permute.xlu0 0
      %810 = vperm.xlu0 %809, %v807
      %v811 = vpop.permute.xlu0 %810
      %v814 = vsel %vm622, %v806, 0
      %816 = vmatprep.subr.mxu0 0.0
      %817 = vmatpush1.msra.mxu0 0.0
      %818 = vmatprep.subr.mxu0 0.0
      %819 = vmatpush1.msra.mxu0 0.0
      %820 = vmatprep.subr.mxu0 0.0
      %821 = vmatpush1.msra.mxu0 0.0
      %822 = vmatprep.subr.mxu0 0.0
      %823 = vmatpush1.msra.mxu0 0.0
      %824 = vmatprep.subr.mxu0 0.0
      %825 = vmatpush1.msra.mxu0 0.0
      %826 = vmatprep.subr.mxu0 0.0
      %827 = vmatpush1.msra.mxu0 0.0
      %828 = vmatprep.subr.mxu0 0.0
      %829 = vmatpush1.msra.mxu0 0.0
      %830 = vmatprep.subr.mxu0 0.0
      %831 = vmatpush1.msra.mxu0 0.0
      %832 = vmatprep.subr.mxu0 0.0
      %833 = vmatpush1.msra.mxu0 0.0
      %834 = vmatprep.subr.mxu0 0.0
      %835 = vmatpush1.msra.mxu0 0.0
      %836 = vmatprep.subr.mxu0 0.0
      %837 = vmatpush1.msra.mxu0 0.0
      %838 = vmatprep.subr.mxu0 0.0
      %839 = vmatpush1.msra.mxu0 0.0
      %840 = vmatprep.subr.mxu0 %v802
      %841 = vmatpush1.msra.mxu0 %v801
      %842 = vmatprep.subr.mxu0 %v791
      %843 = vmatpush1.msra.mxu0 %v790
      %844 = vmatprep.subr.mxu0 %v780
      %845 = vmatpush1.msra.mxu0 %v779
      %846 = vmatprep.subr.mxu0 %v768
      %847 = vmatpush1.msra.mxu0 %v767
      %848 = vmatprep.subr.mxu0 0.0
      %849 = vmatpush2.msra.mxu0 0.0
      %850 = vmatprep.subr.mxu0 0.0
      %851 = vmatpush2.msra.mxu0 0.0
      %852 = vmatprep.subr.mxu0 0.0
      %853 = vmatpush2.msra.mxu0 0.0
      %854 = vmatprep.subr.mxu0 0.0
      %855 = vmatpush2.msra.mxu0 0.0
      %856 = vmatprep.subr.mxu0 0.0
      %857 = vmatpush2.msra.mxu0 0.0
      %858 = vmatprep.subr.mxu0 0.0
      %859 = vmatpush2.msra.mxu0 0.0
      %860 = vmatprep.subr.mxu0 0.0
      %861 = vmatpush2.msra.mxu0 0.0
      %862 = vmatprep.subr.mxu0 0.0
      %863 = vmatpush2.msra.mxu0 0.0
      %864 = vmatprep.subr.mxu0 0.0
      %865 = vmatpush2.msra.mxu0 0.0
      %866 = vmatprep.subr.mxu0 0.0
      %867 = vmatpush2.msra.mxu0 0.0
      %868 = vmatprep.subr.mxu0 0.0
      %869 = vmatpush2.msra.mxu0 0.0
      %870 = vmatprep.subr.mxu0 0.0
      %871 = vmatpush2.msra.mxu0 0.0
      %872 = vmatprep.subr.mxu0 0.0
      %873 = vmatpush2.msra.mxu0 0.0
      %874 = vmatprep.subr.mxu0 0.0
      %875 = vmatpush2.msra.mxu0 0.0
      %876 = vmatprep.subr.mxu0 0.0
      %877 = vmatpush2.msra.mxu0 0.0
      %878 = vmatprep.subr.mxu0 0.0
      %879 = vmatpush2.msra.mxu0 0.0
      %880 = vmatprep.mubr.f32.mxu0 0.0
      %881 = vmatmul.mubr.f32.gmra.mxu0 %v814
      %v882 = vpop.f32.mrf.mxu0
      %v883 = vadd.f32 %v811, %v882
      %v884 = vpop.f32.mrf.mxu0
      %v885 = vadd.f32 %v811, %v884
      %886 = vdwg.mxu0
      %887 = vmatprep.subr.mxu0 0.0
      %888 = vmatpush1.msra.mxu0 0.0
      %889 = vmatprep.subr.mxu0 0.0
      %890 = vmatpush1.msra.mxu0 0.0
      %891 = vmatprep.subr.mxu0 0.0
      %892 = vmatpush1.msra.mxu0 0.0
      %893 = vmatprep.subr.mxu0 0.0
      %894 = vmatpush1.msra.mxu0 0.0
      %895 = vmatprep.subr.mxu0 0.0
      %896 = vmatpush1.msra.mxu0 0.0
      %897 = vmatprep.subr.mxu0 0.0
      %898 = vmatpush1.msra.mxu0 0.0
      %899 = vmatprep.subr.mxu0 0.0
      %900 = vmatpush1.msra.mxu0 0.0
      %901 = vmatprep.subr.mxu0 0.0
      %902 = vmatpush1.msra.mxu0 0.0
      %903 = vmatprep.subr.mxu0 0.0
      %904 = vmatpush1.msra.mxu0 0.0
      %905 = vmatprep.subr.mxu0 0.0
      %906 = vmatpush1.msra.mxu0 0.0
      %907 = vmatprep.subr.mxu0 0.0
      %908 = vmatpush1.msra.mxu0 0.0
      %909 = vmatprep.subr.mxu0 0.0
      %910 = vmatpush1.msra.mxu0 0.0
      %911 = vmatprep.subr.mxu0 0.0
      %912 = vmatpush1.msra.mxu0 %v800
      %913 = vmatprep.subr.mxu0 0.0
      %914 = vmatpush1.msra.mxu0 %v789
      %915 = vmatprep.subr.mxu0 0.0
      %916 = vmatpush1.msra.mxu0 %v778
      %917 = vmatprep.subr.mxu0 0.0
      %918 = vmatpush1.msra.mxu0 %v769
      %919 = vmatprep.subr.mxu0 0.0
      %920 = vmatpush2.msra.mxu0 0.0
      %921 = vmatprep.subr.mxu0 0.0
      %922 = vmatpush2.msra.mxu0 0.0
      %923 = vmatprep.subr.mxu0 0.0
      %924 = vmatpush2.msra.mxu0 0.0
      %925 = vmatprep.subr.mxu0 0.0
      %926 = vmatpush2.msra.mxu0 0.0
      %927 = vmatprep.subr.mxu0 0.0
      %928 = vmatpush2.msra.mxu0 0.0
      %929 = vmatprep.subr.mxu0 0.0
      %930 = vmatpush2.msra.mxu0 0.0
      %931 = vmatprep.subr.mxu0 0.0
      %932 = vmatpush2.msra.mxu0 0.0
      %933 = vmatprep.subr.mxu0 0.0
      %934 = vmatpush2.msra.mxu0 0.0
      %935 = vmatprep.subr.mxu0 0.0
      %936 = vmatpush2.msra.mxu0 0.0
      %937 = vmatprep.subr.mxu0 0.0
      %938 = vmatpush2.msra.mxu0 0.0
      %939 = vmatprep.subr.mxu0 0.0
      %940 = vmatpush2.msra.mxu0 0.0
      %941 = vmatprep.subr.mxu0 0.0
      %942 = vmatpush2.msra.mxu0 0.0
      %943 = vmatprep.subr.mxu0 0.0
      %944 = vmatpush2.msra.mxu0 0.0
      %945 = vmatprep.subr.mxu0 0.0
      %946 = vmatpush2.msra.mxu0 0.0
      %947 = vmatprep.subr.mxu0 0.0
      %948 = vmatpush2.msra.mxu0 0.0
      %949 = vmatprep.subr.mxu0 0.0
      %950 = vmatpush2.msra.mxu0 0.0
      %951 = vmatprep.mubr.f32.mxu0 0.0
      %952 = vmatmul.mubr.f32.gmra.mxu0 %v814
      %v953 = vpop.f32.mrf.mxu0
      %v954 = vadd.f32 %v811, %v953
      %v955 = vpop.f32.mrf.mxu0
      %956 = vdwg.mxu0
      %v957 = vmax.f32 %v883, 0.0
      %v958 = vmax.f32 %v885, 0.0
      %v959 = vmax.f32 %v954, 0.0
      %960 = vst [vmem:[%s278] sm:$0xff] %v957
      %961 = vst [vmem:[%s278 + $0x8] sm:$0xff] %v958
      %962 = vst.msk [vmem:[%s278 + $0x10] sm:$0xff] %vm515, %v959
      %p963 = scmp.lt.s32.totalorder %s18, 1
      %s964 = scalar_select %p963, %s18, 1
      %s965 = smul.addr %s964, 3
      %s966 = smul.addr %s965, 8
      %s967 = scalar_lea.vmem %s7, %s966
      // Predicated region
      $region49: #{dscnn_forward.1} parent=47 // pred_check
        %p968 = pneg %p188
      $region50: #{dscnn_forward.1} parent=47 // pred_check_branch
        %970 = sbr.rel (%p968) target = $region52
      $region51: #{dscnn_forward.1} parent=47 // pred_region
        _
      $region52: #{dscnn_forward.1} parent=47 // pred_fallthru
        _
    $region48: #{dscnn_forward.1} parent=5 // pred_fallthru
      _
    %p971 = scmp.le.s32.totalorder 2, %s13
    // Predicated region
    $region53: #{dscnn_forward.1} parent=5 // pred_check
      %p972 = pneg %p971
    $region54: #{dscnn_forward.1} parent=5 // pred_check_branch
      %974 = sbr.rel (%p972) target = $region56
    $region55: #{dscnn_forward.1} parent=5 // pred_region
      %s975 = ssub.s32 %s13, 2
      // Predicated region
      $region57: #{dscnn_forward.1} parent=55 // pred_check
        %p976 = pneg %p194
      $region58: #{dscnn_forward.1} parent=55 // pred_check_branch
        %978 = sbr.rel (%p976) target = $region60
      $region59: #{dscnn_forward.1} parent=55 // pred_region
        %p979 = scmp.lt.s32.totalorder %s19, 1
        %s980 = scalar_select %p979, %s19, 1
        %s981 = smul.addr %s980, 3
        %s982 = smul.addr %s981, 8
        %s983 = scalar_lea.vmem %s7, %s982
      $region60: #{dscnn_forward.1} parent=55 // pred_fallthru
        _
    $region56: #{dscnn_forward.1} parent=5 // pred_fallthru
      _
  $region6: #{dscnn_forward.1} parent=0 // loop_footer
    %s17 = sadd.s32 1, %s13
  $region7: #{dscnn_forward.1} parent=0 // loop_footer_branch
    %12 = sbr.rel target = $region3
  $region8: #{dscnn_forward.1} parent=0 // loop_exit
    _

</llo_original>
